<compile_context>
chip_gen: v5e
topology: v5e:2x2
jax: 0.10.0
libtpu: 0.0.40
codegen_flags: <defaults>
</compile_context>

<pallas_src>
import jax
import jax.numpy as jnp
from jax.experimental import pallas as pl
from jax.experimental.pallas import tpu as pltpu


def _lstm_block_kernel(x_ref, w_ref, u_ref, b_ref, h0_ref, c0_ref,
                       out_ref, h_sc, c_sc):
    """One grid step = one block of TT time steps.

    x_ref:   (TT*B, D)    input rows for this time block (time-major, flattened)
    w_ref:   (D, 4H)      input->gate weights (resident across the grid)
    u_ref:   (H, 4H)      recurrent weights   (resident across the grid)
    b_ref:   (1, 4H)      gate bias (f32)
    h0_ref:  (B, H)       initial hidden state
    c0_ref:  (B, H)       initial cell state
    out_ref: (TT, B, 2H)  packed [h | c] per time step of this block
    h_sc/c_sc: (B, H) f32 carried state across grid iterations
    """
    TT = out_ref.shape[0]
    B, H = h_sc.shape

    nt = pl.program_id(0)

    @pl.when(nt == 0)
    def _():
        h_sc[...] = h0_ref[...].astype(jnp.float32)
        c_sc[...] = c0_ref[...].astype(jnp.float32)

    # Time-parallel input projection for the whole block: a single
    # (TT*B, D) @ (D, 4H) MXU matmul with the bias folded in, instead of TT
    # tiny per-step matmuls. f32 accumulation regardless of param dtype.
    gates_x = (jnp.dot(x_ref[...], w_ref[...],
                       preferred_element_type=jnp.float32)
               + b_ref[...])                              # (TT*B, 4H) f32

    u = u_ref[...]
    h = h_sc[...]                                         # (B, H) f32
    c = c_sc[...]                                         # (B, H) f32

    # Inner recurrence over the TT steps of this block, fully unrolled at trace
    # time (equivalent to lax.fori_loop(..., unroll=True) at these sizes).
    for tt in range(TT):
        g = gates_x[tt * B:(tt + 1) * B, :] + jnp.dot(
            h.astype(u.dtype), u, preferred_element_type=jnp.float32)  # (B, 4H)
        f_gate = jax.nn.sigmoid(g[:, 0 * H:1 * H])
        i_gate = jax.nn.sigmoid(g[:, 1 * H:2 * H])
        g_gate = jnp.tanh(g[:, 2 * H:3 * H])
        o_gate = jax.nn.sigmoid(g[:, 3 * H:4 * H])
        c = f_gate * c + i_gate * g_gate
        h = o_gate * jnp.tanh(c)
        # Pack hidden and cell state into one output block; the HBM writeback
        # for this block is a single (TT, B, 2H) DMA.
        out_ref[tt, :, 0:H] = h.astype(out_ref.dtype)
        out_ref[tt, :, H:2 * H] = c.astype(out_ref.dtype)

    h_sc[...] = h
    c_sc[...] = c


def base_rnn_forward(x, W, U, b, hidden_state=None, cell_state=None,
                     batch_first=True, time_block=8,
                     param_dtype=jnp.float32):
    """Equivalent of BaseRNN.forward for an LSTMLR-type cell.

    x: [B, T, D] if batch_first else [T, B, D]
    W: [D, 4H], U: [H, 4H], b: [4H]  (gate order f, i, g, o)
    Returns (hiddenStates, cellStates) with shape [B, T, H] (batch_first) or
    [T, B, H] otherwise, matching the PyTorch module.
    """
    if batch_first:
        x_tm = jnp.transpose(x, (1, 0, 2))                # -> [T, B, D]
    else:
        x_tm = x
    T, B, D = x_tm.shape
    H = U.shape[0]
    assert W.shape == (D, 4 * H) and U.shape == (H, 4 * H) and b.shape == (4 * H,)

    if hidden_state is None:
        hidden_state = jnp.zeros((B, H), jnp.float32)
    if cell_state is None:
        cell_state = jnp.zeros((B, H), jnp.float32)

    # Pick the time-block size. When more than one block is used, the flattened
    # x block's leading dim (TT*B) must be 8-aligned; otherwise fall back to a
    # single block (full-extent block dims are always legal).
    TT = max(1, min(int(time_block), T))
    num_blocks = -(-T // TT)
    if num_blocks > 1 and (TT * B) % 8 != 0:
        TT = T
        num_blocks = 1
    T_pad = num_blocks * TT

    pd = jnp.dtype(param_dtype)
    # Zero-pad the tail time steps (their outputs are discarded below).
    x_pad = jnp.pad(x_tm, ((0, T_pad - T), (0, 0), (0, 0)))
    x_2d = x_pad.reshape(T_pad * B, D).astype(pd)         # time-major, flattened
    W_p = W.astype(pd)
    U_p = U.astype(pd)
    b2d = b.reshape(1, 4 * H).astype(jnp.float32)
    h0 = hidden_state.astype(jnp.float32)
    c0 = cell_state.astype(jnp.float32)

    grid_spec = pltpu.PrefetchScalarGridSpec(
        num_scalar_prefetch=0,
        grid=(num_blocks,),
        in_specs=[
            pl.BlockSpec((TT * B, D), lambda nt: (nt, 0)),     # x rows, per block
            pl.BlockSpec((D, 4 * H), lambda nt: (0, 0)),       # W (resident)
            pl.BlockSpec((H, 4 * H), lambda nt: (0, 0)),       # U (resident)
            pl.BlockSpec((1, 4 * H), lambda nt: (0, 0)),       # bias
            pl.BlockSpec((B, H), lambda nt: (0, 0)),           # h0
            pl.BlockSpec((B, H), lambda nt: (0, 0)),           # c0
        ],
        out_specs=pl.BlockSpec((TT, B, 2 * H), lambda nt: (nt, 0, 0)),
        scratch_shapes=[
            pltpu.VMEM((B, H), jnp.float32),                   # carried h
            pltpu.VMEM((B, H), jnp.float32),                   # carried c
        ],
    )

    packed = pl.pallas_call(
        _lstm_block_kernel,
        out_shape=jax.ShapeDtypeStruct((T_pad, B, 2 * H), jnp.float32),
        grid_spec=grid_spec,
        compiler_params=pltpu.CompilerParams(
            dimension_semantics=("arbitrary",)),               # time is sequential
    )(x_2d, W_p, U_p, b2d, h0, c0)

    hs_tm = packed[:T, :, :H]
    cs_tm = packed[:T, :, H:]
    if batch_first:
        return jnp.transpose(hs_tm, (1, 0, 2)), jnp.transpose(cs_tm, (1, 0, 2))
    return hs_tm, cs_tm


def _reference(x, W, U, b, h0, c0):
    """Pure-JAX reference of the same unroll (for correctness check)."""
    H = U.shape[0]

    def step(carry, x_t):
        h, c = carry
        gates = x_t @ W + h @ U + b
        f = jax.nn.sigmoid(gates[:, 0 * H:1 * H])
        i = jax.nn.sigmoid(gates[:, 1 * H:2 * H])
        g = jnp.tanh(gates[:, 2 * H:3 * H])
        o = jax.nn.sigmoid(gates[:, 3 * H:4 * H])
        c_new = f * c + i * g
        h_new = o * jnp.tanh(c_new)
        return (h_new, c_new), (h_new, c_new)

    x_tm = jnp.transpose(x, (1, 0, 2))
    (_, _), (hs, cs) = jax.lax.scan(step, (h0, c0), x_tm)
    return jnp.transpose(hs, (1, 0, 2)), jnp.transpose(cs, (1, 0, 2))


if __name__ == "__main__":
    B, T, D, H = 2, 8, 16, 32

    key = jax.random.PRNGKey(0)
    kx, kw, ku, kb = jax.random.split(key, 4)
    x = jax.random.normal(kx, (B, T, D), jnp.float32)
    # Cell parameters: input / recurrent weights for the 4 gates (f, i, g, o)
    # plus gate biases.
    W = 0.1 * jax.random.normal(kw, (D, 4 * H), jnp.float32)
    U = 0.1 * jax.random.normal(ku, (H, 4 * H), jnp.float32)
    b = 0.1 * jax.random.normal(kb, (4 * H,), jnp.float32)

    h_ref, c_ref = _reference(x, W, U, b,
                              jnp.zeros((B, H), jnp.float32),
                              jnp.zeros((B, H), jnp.float32))

    # f32 path (tight check).
    hidden_states, cell_states = jax.block_until_ready(
        base_rnn_forward(x, W, U, b))
    assert hidden_states.shape == (B, T, H)
    assert cell_states.shape == (B, T, H)
    assert jnp.allclose(hidden_states, h_ref, atol=1e-5, rtol=1e-5)
    assert jnp.allclose(cell_states, c_ref, atol=1e-5, rtol=1e-5)

    # bf16 parameter/input path (f32 accumulation + f32 state): loose check.
    hs16, cs16 = jax.block_until_ready(
        base_rnn_forward(x, W, U, b, param_dtype=jnp.bfloat16))
    assert jnp.allclose(hs16, h_ref, atol=5e-2, rtol=5e-2)
    assert jnp.allclose(cs16, c_ref, atol=5e-2, rtol=5e-2)

    print("KERNEL_OK")
</pallas_src>

<mosaic_0001>
module attributes {stable_mosaic.version = 11 : i64} {
  func.func @_lstm_block_kernel(%arg0: i32, %arg1: memref<16x16xf32, #tpu.memory_space<vmem>>, %arg2: memref<16x128xf32, #tpu.memory_space<vmem>>, %arg3: memref<32x128xf32, #tpu.memory_space<vmem>>, %arg4: memref<1x128xf32, #tpu.memory_space<vmem>>, %arg5: memref<2x32xf32, #tpu.memory_space<vmem>>, %arg6: memref<2x32xf32, #tpu.memory_space<vmem>>, %arg7: memref<8x2x64xf32, #tpu.memory_space<vmem>>, %arg8: memref<2x32xf32, #tpu.memory_space<vmem>>, %arg9: memref<2x32xf32, #tpu.memory_space<vmem>>) attributes {dimension_semantics = [#tpu.dimension_semantics<arbitrary>], iteration_bounds = array<i64: 1>, scalar_prefetch = 0 : i64, scratch_operands = 2 : i64, tpu.core_type = #tpu.core_type<tc>, window_params = [{transform_indices = @transform_0, window_bounds = array<i64: 16, 16>}, {pipeline_mode = #tpu.pipeline_mode<synchronous>, transform_indices = @transform_1, window_bounds = array<i64: 16, 128>}, {pipeline_mode = #tpu.pipeline_mode<synchronous>, transform_indices = @transform_2, window_bounds = array<i64: 32, 128>}, {pipeline_mode = #tpu.pipeline_mode<synchronous>, transform_indices = @transform_3, window_bounds = array<i64: 1, 128>}, {pipeline_mode = #tpu.pipeline_mode<synchronous>, transform_indices = @transform_4, window_bounds = array<i64: 2, 32>}, {pipeline_mode = #tpu.pipeline_mode<synchronous>, transform_indices = @transform_5, window_bounds = array<i64: 2, 32>}, {transform_indices = @transform_6, window_bounds = array<i64: 8, 2, 64>}]} {
    %c0_i32 = arith.constant 0 : i32
    %0 = arith.cmpi eq, %arg0, %c0_i32 : i32
    %1 = arith.extui %0 : i1 to i32
    %c0_i32_0 = arith.constant 0 : i32
    %2 = arith.cmpi ne, %1, %c0_i32_0 : i32
    scf.if %2 {
      %c0_88 = arith.constant 0 : index
      %c0_89 = arith.constant 0 : index
      %286 = vector.load %arg5[%c0_88, %c0_89] : memref<2x32xf32, #tpu.memory_space<vmem>>, vector<2x32xf32>
      %c0_90 = arith.constant 0 : index
      %c0_91 = arith.constant 0 : index
      %287 = vector.load %arg8[%c0_90, %c0_91] : memref<2x32xf32, #tpu.memory_space<vmem>>, vector<2x32xf32>
      tpu.vector_store %arg8[%c0_90, %c0_91], %286 {strides = array<i32>} : memref<2x32xf32, #tpu.memory_space<vmem>>, vector<2x32xf32>,
      %c0_92 = arith.constant 0 : index
      %c0_93 = arith.constant 0 : index
      %288 = vector.load %arg6[%c0_92, %c0_93] : memref<2x32xf32, #tpu.memory_space<vmem>>, vector<2x32xf32>
      %c0_94 = arith.constant 0 : index
      %c0_95 = arith.constant 0 : index
      %289 = vector.load %arg9[%c0_94, %c0_95] : memref<2x32xf32, #tpu.memory_space<vmem>>, vector<2x32xf32>
      tpu.vector_store %arg9[%c0_94, %c0_95], %288 {strides = array<i32>} : memref<2x32xf32, #tpu.memory_space<vmem>>, vector<2x32xf32>,
    } else {
    }
    %c0 = arith.constant 0 : index
    %c0_1 = arith.constant 0 : index
    %3 = vector.load %arg1[%c0, %c0_1] : memref<16x16xf32, #tpu.memory_space<vmem>>, vector<16x16xf32>
    %c0_2 = arith.constant 0 : index
    %c0_3 = arith.constant 0 : index
    %4 = vector.load %arg2[%c0_2, %c0_3] : memref<16x128xf32, #tpu.memory_space<vmem>>, vector<16x128xf32>
    %cst = arith.constant dense<0.000000e+00> : vector<16x128xf32>
    %5 = tpu.matmul %3, %4, %cst {dimension_numbers = #tpu.dot_dimension_numbers<[1], [0], [0], [1], [0, 0, 1, 1], [], []>} : vector<16x16xf32>, vector<16x128xf32>, vector<16x128xf32> -> vector<16x128xf32>
    %c0_4 = arith.constant 0 : index
    %c0_5 = arith.constant 0 : index
    %6 = vector.load %arg4[%c0_4, %c0_5] : memref<1x128xf32, #tpu.memory_space<vmem>>, vector<1x128xf32>
    %7 = vector.broadcast %6 : vector<1x128xf32> to vector<16x128xf32>
    %8 = arith.addf %5, %7 : vector<16x128xf32>
    %c0_6 = arith.constant 0 : index
    %c0_7 = arith.constant 0 : index
    %9 = vector.load %arg3[%c0_6, %c0_7] : memref<32x128xf32, #tpu.memory_space<vmem>>, vector<32x128xf32>
    %c0_8 = arith.constant 0 : index
    %c0_9 = arith.constant 0 : index
    %10 = vector.load %arg8[%c0_8, %c0_9] : memref<2x32xf32, #tpu.memory_space<vmem>>, vector<2x32xf32>
    %c0_10 = arith.constant 0 : index
    %c0_11 = arith.constant 0 : index
    %11 = vector.load %arg9[%c0_10, %c0_11] : memref<2x32xf32, #tpu.memory_space<vmem>>, vector<2x32xf32>
    %12 = vector.extract_strided_slice %8 {offsets = [0, 0], sizes = [2, 128], strides = [1, 1]} : vector<16x128xf32> to vector<2x128xf32>
    %cst_12 = arith.constant dense<0.000000e+00> : vector<2x128xf32>
    %13 = tpu.matmul %10, %9, %cst_12 {dimension_numbers = #tpu.dot_dimension_numbers<[1], [0], [0], [1], [0, 0, 1, 1], [], []>} : vector<2x32xf32>, vector<32x128xf32>, vector<2x128xf32> -> vector<2x128xf32>
    %14 = arith.addf %12, %13 : vector<2x128xf32>
    %15 = vector.extract_strided_slice %14 {offsets = [0, 0], sizes = [2, 32], strides = [1, 1]} : vector<2x128xf32> to vector<2x32xf32>
    %16 = arith.negf %15 : vector<2x32xf32>
    %17 = math.exp %16 : vector<2x32xf32>
    %cst_13 = arith.constant 1.000000e+00 : f32
    %18 = vector.broadcast %cst_13 : f32 to vector<2x32xf32>
    %19 = arith.addf %18, %17 : vector<2x32xf32>
    %20 = arith.divf %18, %19 : vector<2x32xf32>
    %21 = vector.extract_strided_slice %14 {offsets = [0, 32], sizes = [2, 32], strides = [1, 1]} : vector<2x128xf32> to vector<2x32xf32>
    %22 = arith.negf %21 : vector<2x32xf32>
    %23 = math.exp %22 : vector<2x32xf32>
    %cst_14 = arith.constant 1.000000e+00 : f32
    %24 = vector.broadcast %cst_14 : f32 to vector<2x32xf32>
    %25 = arith.addf %24, %23 : vector<2x32xf32>
    %26 = arith.divf %24, %25 : vector<2x32xf32>
    %27 = vector.extract_strided_slice %14 {offsets = [0, 64], sizes = [2, 32], strides = [1, 1]} : vector<2x128xf32> to vector<2x32xf32>
    %28 = math.tanh %27 : vector<2x32xf32>
    %29 = vector.extract_strided_slice %14 {offsets = [0, 96], sizes = [2, 32], strides = [1, 1]} : vector<2x128xf32> to vector<2x32xf32>
    %30 = arith.negf %29 : vector<2x32xf32>
    %31 = math.exp %30 : vector<2x32xf32>
    %cst_15 = arith.constant 1.000000e+00 : f32
    %32 = vector.broadcast %cst_15 : f32 to vector<2x32xf32>
    %33 = arith.addf %32, %31 : vector<2x32xf32>
    %34 = arith.divf %32, %33 : vector<2x32xf32>
    %35 = arith.mulf %20, %11 : vector<2x32xf32>
    %36 = arith.mulf %26, %28 : vector<2x32xf32>
    %37 = arith.addf %35, %36 : vector<2x32xf32>
    %38 = math.tanh %37 : vector<2x32xf32>
    %39 = arith.mulf %34, %38 : vector<2x32xf32>
    %c0_16 = arith.constant 0 : index
    %c0_17 = arith.constant 0 : index
    %c0_18 = arith.constant 0 : index
    %40 = vector.load %arg7[%c0_16, %c0_17, %c0_18] : memref<8x2x64xf32, #tpu.memory_space<vmem>>, vector<1x2x32xf32>
    %41 = vector.shape_cast %40 : vector<1x2x32xf32> to vector<2x32xf32>
    %42 = vector.shape_cast %39 : vector<2x32xf32> to vector<1x2x32xf32>
    tpu.vector_store %arg7[%c0_16, %c0_17, %c0_18], %42 {strides = array<i32>} : memref<8x2x64xf32, #tpu.memory_space<vmem>>, vector<1x2x32xf32>,
    %c0_19 = arith.constant 0 : index
    %c0_20 = arith.constant 0 : index
    %c32 = arith.constant 32 : index
    %43 = vector.load %arg7[%c0_19, %c0_20, %c32] : memref<8x2x64xf32, #tpu.memory_space<vmem>>, vector<1x2x32xf32>
    %44 = vector.shape_cast %43 : vector<1x2x32xf32> to vector<2x32xf32>
    %45 = vector.shape_cast %37 : vector<2x32xf32> to vector<1x2x32xf32>
    tpu.vector_store %arg7[%c0_19, %c0_20, %c32], %45 {strides = array<i32>} : memref<8x2x64xf32, #tpu.memory_space<vmem>>, vector<1x2x32xf32>,
    %46 = vector.extract_strided_slice %8 {offsets = [2, 0], sizes = [2, 128], strides = [1, 1]} : vector<16x128xf32> to vector<2x128xf32>
    %cst_21 = arith.constant dense<0.000000e+00> : vector<2x128xf32>
    %47 = tpu.matmul %39, %9, %cst_21 {dimension_numbers = #tpu.dot_dimension_numbers<[1], [0], [0], [1], [0, 0, 1, 1], [], []>} : vector<2x32xf32>, vector<32x128xf32>, vector<2x128xf32> -> vector<2x128xf32>
    %48 = arith.addf %46, %47 : vector<2x128xf32>
    %49 = vector.extract_strided_slice %48 {offsets = [0, 0], sizes = [2, 32], strides = [1, 1]} : vector<2x128xf32> to vector<2x32xf32>
    %50 = arith.negf %49 : vector<2x32xf32>
    %51 = math.exp %50 : vector<2x32xf32>
    %cst_22 = arith.constant 1.000000e+00 : f32
    %52 = vector.broadcast %cst_22 : f32 to vector<2x32xf32>
    %53 = arith.addf %52, %51 : vector<2x32xf32>
    %54 = arith.divf %52, %53 : vector<2x32xf32>
    %55 = vector.extract_strided_slice %48 {offsets = [0, 32], sizes = [2, 32], strides = [1, 1]} : vector<2x128xf32> to vector<2x32xf32>
    %56 = arith.negf %55 : vector<2x32xf32>
    %57 = math.exp %56 : vector<2x32xf32>
    %cst_23 = arith.constant 1.000000e+00 : f32
    %58 = vector.broadcast %cst_23 : f32 to vector<2x32xf32>
    %59 = arith.addf %58, %57 : vector<2x32xf32>
    %60 = arith.divf %58, %59 : vector<2x32xf32>
    %61 = vector.extract_strided_slice %48 {offsets = [0, 64], sizes = [2, 32], strides = [1, 1]} : vector<2x128xf32> to vector<2x32xf32>
    %62 = math.tanh %61 : vector<2x32xf32>
    %63 = vector.extract_strided_slice %48 {offsets = [0, 96], sizes = [2, 32], strides = [1, 1]} : vector<2x128xf32> to vector<2x32xf32>
    %64 = arith.negf %63 : vector<2x32xf32>
    %65 = math.exp %64 : vector<2x32xf32>
    %cst_24 = arith.constant 1.000000e+00 : f32
    %66 = vector.broadcast %cst_24 : f32 to vector<2x32xf32>
    %67 = arith.addf %66, %65 : vector<2x32xf32>
    %68 = arith.divf %66, %67 : vector<2x32xf32>
    %69 = arith.mulf %54, %37 : vector<2x32xf32>
    %70 = arith.mulf %60, %62 : vector<2x32xf32>
    %71 = arith.addf %69, %70 : vector<2x32xf32>
    %72 = math.tanh %71 : vector<2x32xf32>
    %73 = arith.mulf %68, %72 : vector<2x32xf32>
    %c1 = arith.constant 1 : index
    %c0_25 = arith.constant 0 : index
    %c0_26 = arith.constant 0 : index
    %74 = vector.load %arg7[%c1, %c0_25, %c0_26] : memref<8x2x64xf32, #tpu.memory_space<vmem>>, vector<1x2x32xf32>
    %75 = vector.shape_cast %74 : vector<1x2x32xf32> to vector<2x32xf32>
    %76 = vector.shape_cast %73 : vector<2x32xf32> to vector<1x2x32xf32>
    tpu.vector_store %arg7[%c1, %c0_25, %c0_26], %76 {strides = array<i32>} : memref<8x2x64xf32, #tpu.memory_space<vmem>>, vector<1x2x32xf32>,
    %c1_27 = arith.constant 1 : index
    %c0_28 = arith.constant 0 : index
    %c32_29 = arith.constant 32 : index
    %77 = vector.load %arg7[%c1_27, %c0_28, %c32_29] : memref<8x2x64xf32, #tpu.memory_space<vmem>>, vector<1x2x32xf32>
    %78 = vector.shape_cast %77 : vector<1x2x32xf32> to vector<2x32xf32>
    %79 = vector.shape_cast %71 : vector<2x32xf32> to vector<1x2x32xf32>
    tpu.vector_store %arg7[%c1_27, %c0_28, %c32_29], %79 {strides = array<i32>} : memref<8x2x64xf32, #tpu.memory_space<vmem>>, vector<1x2x32xf32>,
    %80 = vector.extract_strided_slice %8 {offsets = [4, 0], sizes = [2, 128], strides = [1, 1]} : vector<16x128xf32> to vector<2x128xf32>
    %cst_30 = arith.constant dense<0.000000e+00> : vector<2x128xf32>
    %81 = tpu.matmul %73, %9, %cst_30 {dimension_numbers = #tpu.dot_dimension_numbers<[1], [0], [0], [1], [0, 0, 1, 1], [], []>} : vector<2x32xf32>, vector<32x128xf32>, vector<2x128xf32> -> vector<2x128xf32>
    %82 = arith.addf %80, %81 : vector<2x128xf32>
    %83 = vector.extract_strided_slice %82 {offsets = [0, 0], sizes = [2, 32], strides = [1, 1]} : vector<2x128xf32> to vector<2x32xf32>
    %84 = arith.negf %83 : vector<2x32xf32>
    %85 = math.exp %84 : vector<2x32xf32>
    %cst_31 = arith.constant 1.000000e+00 : f32
    %86 = vector.broadcast %cst_31 : f32 to vector<2x32xf32>
    %87 = arith.addf %86, %85 : vector<2x32xf32>
    %88 = arith.divf %86, %87 : vector<2x32xf32>
    %89 = vector.extract_strided_slice %82 {offsets = [0, 32], sizes = [2, 32], strides = [1, 1]} : vector<2x128xf32> to vector<2x32xf32>
    %90 = arith.negf %89 : vector<2x32xf32>
    %91 = math.exp %90 : vector<2x32xf32>
    %cst_32 = arith.constant 1.000000e+00 : f32
    %92 = vector.broadcast %cst_32 : f32 to vector<2x32xf32>
    %93 = arith.addf %92, %91 : vector<2x32xf32>
    %94 = arith.divf %92, %93 : vector<2x32xf32>
    %95 = vector.extract_strided_slice %82 {offsets = [0, 64], sizes = [2, 32], strides = [1, 1]} : vector<2x128xf32> to vector<2x32xf32>
    %96 = math.tanh %95 : vector<2x32xf32>
    %97 = vector.extract_strided_slice %82 {offsets = [0, 96], sizes = [2, 32], strides = [1, 1]} : vector<2x128xf32> to vector<2x32xf32>
    %98 = arith.negf %97 : vector<2x32xf32>
    %99 = math.exp %98 : vector<2x32xf32>
    %cst_33 = arith.constant 1.000000e+00 : f32
    %100 = vector.broadcast %cst_33 : f32 to vector<2x32xf32>
    %101 = arith.addf %100, %99 : vector<2x32xf32>
    %102 = arith.divf %100, %101 : vector<2x32xf32>
    %103 = arith.mulf %88, %71 : vector<2x32xf32>
    %104 = arith.mulf %94, %96 : vector<2x32xf32>
    %105 = arith.addf %103, %104 : vector<2x32xf32>
    %106 = math.tanh %105 : vector<2x32xf32>
    %107 = arith.mulf %102, %106 : vector<2x32xf32>
    %c2 = arith.constant 2 : index
    %c0_34 = arith.constant 0 : index
    %c0_35 = arith.constant 0 : index
    %108 = vector.load %arg7[%c2, %c0_34, %c0_35] : memref<8x2x64xf32, #tpu.memory_space<vmem>>, vector<1x2x32xf32>
    %109 = vector.shape_cast %108 : vector<1x2x32xf32> to vector<2x32xf32>
    %110 = vector.shape_cast %107 : vector<2x32xf32> to vector<1x2x32xf32>
    tpu.vector_store %arg7[%c2, %c0_34, %c0_35], %110 {strides = array<i32>} : memref<8x2x64xf32, #tpu.memory_space<vmem>>, vector<1x2x32xf32>,
    %c2_36 = arith.constant 2 : index
    %c0_37 = arith.constant 0 : index
    %c32_38 = arith.constant 32 : index
    %111 = vector.load %arg7[%c2_36, %c0_37, %c32_38] : memref<8x2x64xf32, #tpu.memory_space<vmem>>, vector<1x2x32xf32>
    %112 = vector.shape_cast %111 : vector<1x2x32xf32> to vector<2x32xf32>
    %113 = vector.shape_cast %105 : vector<2x32xf32> to vector<1x2x32xf32>
    tpu.vector_store %arg7[%c2_36, %c0_37, %c32_38], %113 {strides = array<i32>} : memref<8x2x64xf32, #tpu.memory_space<vmem>>, vector<1x2x32xf32>,
    %114 = vector.extract_strided_slice %8 {offsets = [6, 0], sizes = [2, 128], strides = [1, 1]} : vector<16x128xf32> to vector<2x128xf32>
    %cst_39 = arith.constant dense<0.000000e+00> : vector<2x128xf32>
    %115 = tpu.matmul %107, %9, %cst_39 {dimension_numbers = #tpu.dot_dimension_numbers<[1], [0], [0], [1], [0, 0, 1, 1], [], []>} : vector<2x32xf32>, vector<32x128xf32>, vector<2x128xf32> -> vector<2x128xf32>
    %116 = arith.addf %114, %115 : vector<2x128xf32>
    %117 = vector.extract_strided_slice %116 {offsets = [0, 0], sizes = [2, 32], strides = [1, 1]} : vector<2x128xf32> to vector<2x32xf32>
    %118 = arith.negf %117 : vector<2x32xf32>
    %119 = math.exp %118 : vector<2x32xf32>
    %cst_40 = arith.constant 1.000000e+00 : f32
    %120 = vector.broadcast %cst_40 : f32 to vector<2x32xf32>
    %121 = arith.addf %120, %119 : vector<2x32xf32>
    %122 = arith.divf %120, %121 : vector<2x32xf32>
    %123 = vector.extract_strided_slice %116 {offsets = [0, 32], sizes = [2, 32], strides = [1, 1]} : vector<2x128xf32> to vector<2x32xf32>
    %124 = arith.negf %123 : vector<2x32xf32>
    %125 = math.exp %124 : vector<2x32xf32>
    %cst_41 = arith.constant 1.000000e+00 : f32
    %126 = vector.broadcast %cst_41 : f32 to vector<2x32xf32>
    %127 = arith.addf %126, %125 : vector<2x32xf32>
    %128 = arith.divf %126, %127 : vector<2x32xf32>
    %129 = vector.extract_strided_slice %116 {offsets = [0, 64], sizes = [2, 32], strides = [1, 1]} : vector<2x128xf32> to vector<2x32xf32>
    %130 = math.tanh %129 : vector<2x32xf32>
    %131 = vector.extract_strided_slice %116 {offsets = [0, 96], sizes = [2, 32], strides = [1, 1]} : vector<2x128xf32> to vector<2x32xf32>
    %132 = arith.negf %131 : vector<2x32xf32>
    %133 = math.exp %132 : vector<2x32xf32>
    %cst_42 = arith.constant 1.000000e+00 : f32
    %134 = vector.broadcast %cst_42 : f32 to vector<2x32xf32>
    %135 = arith.addf %134, %133 : vector<2x32xf32>
    %136 = arith.divf %134, %135 : vector<2x32xf32>
    %137 = arith.mulf %122, %105 : vector<2x32xf32>
    %138 = arith.mulf %128, %130 : vector<2x32xf32>
    %139 = arith.addf %137, %138 : vector<2x32xf32>
    %140 = math.tanh %139 : vector<2x32xf32>
    %141 = arith.mulf %136, %140 : vector<2x32xf32>
    %c3 = arith.constant 3 : index
    %c0_43 = arith.constant 0 : index
    %c0_44 = arith.constant 0 : index
    %142 = vector.load %arg7[%c3, %c0_43, %c0_44] : memref<8x2x64xf32, #tpu.memory_space<vmem>>, vector<1x2x32xf32>
    %143 = vector.shape_cast %142 : vector<1x2x32xf32> to vector<2x32xf32>
    %144 = vector.shape_cast %141 : vector<2x32xf32> to vector<1x2x32xf32>
    tpu.vector_store %arg7[%c3, %c0_43, %c0_44], %144 {strides = array<i32>} : memref<8x2x64xf32, #tpu.memory_space<vmem>>, vector<1x2x32xf32>,
    %c3_45 = arith.constant 3 : index
    %c0_46 = arith.constant 0 : index
    %c32_47 = arith.constant 32 : index
    %145 = vector.load %arg7[%c3_45, %c0_46, %c32_47] : memref<8x2x64xf32, #tpu.memory_space<vmem>>, vector<1x2x32xf32>
    %146 = vector.shape_cast %145 : vector<1x2x32xf32> to vector<2x32xf32>
    %147 = vector.shape_cast %139 : vector<2x32xf32> to vector<1x2x32xf32>
    tpu.vector_store %arg7[%c3_45, %c0_46, %c32_47], %147 {strides = array<i32>} : memref<8x2x64xf32, #tpu.memory_space<vmem>>, vector<1x2x32xf32>,
    %148 = vector.extract_strided_slice %8 {offsets = [8, 0], sizes = [2, 128], strides = [1, 1]} : vector<16x128xf32> to vector<2x128xf32>
    %cst_48 = arith.constant dense<0.000000e+00> : vector<2x128xf32>
    %149 = tpu.matmul %141, %9, %cst_48 {dimension_numbers = #tpu.dot_dimension_numbers<[1], [0], [0], [1], [0, 0, 1, 1], [], []>} : vector<2x32xf32>, vector<32x128xf32>, vector<2x128xf32> -> vector<2x128xf32>
    %150 = arith.addf %148, %149 : vector<2x128xf32>
    %151 = vector.extract_strided_slice %150 {offsets = [0, 0], sizes = [2, 32], strides = [1, 1]} : vector<2x128xf32> to vector<2x32xf32>
    %152 = arith.negf %151 : vector<2x32xf32>
    %153 = math.exp %152 : vector<2x32xf32>
    %cst_49 = arith.constant 1.000000e+00 : f32
    %154 = vector.broadcast %cst_49 : f32 to vector<2x32xf32>
    %155 = arith.addf %154, %153 : vector<2x32xf32>
    %156 = arith.divf %154, %155 : vector<2x32xf32>
    %157 = vector.extract_strided_slice %150 {offsets = [0, 32], sizes = [2, 32], strides = [1, 1]} : vector<2x128xf32> to vector<2x32xf32>
    %158 = arith.negf %157 : vector<2x32xf32>
    %159 = math.exp %158 : vector<2x32xf32>
    %cst_50 = arith.constant 1.000000e+00 : f32
    %160 = vector.broadcast %cst_50 : f32 to vector<2x32xf32>
    %161 = arith.addf %160, %159 : vector<2x32xf32>
    %162 = arith.divf %160, %161 : vector<2x32xf32>
    %163 = vector.extract_strided_slice %150 {offsets = [0, 64], sizes = [2, 32], strides = [1, 1]} : vector<2x128xf32> to vector<2x32xf32>
    %164 = math.tanh %163 : vector<2x32xf32>
    %165 = vector.extract_strided_slice %150 {offsets = [0, 96], sizes = [2, 32], strides = [1, 1]} : vector<2x128xf32> to vector<2x32xf32>
    %166 = arith.negf %165 : vector<2x32xf32>
    %167 = math.exp %166 : vector<2x32xf32>
    %cst_51 = arith.constant 1.000000e+00 : f32
    %168 = vector.broadcast %cst_51 : f32 to vector<2x32xf32>
    %169 = arith.addf %168, %167 : vector<2x32xf32>
    %170 = arith.divf %168, %169 : vector<2x32xf32>
    %171 = arith.mulf %156, %139 : vector<2x32xf32>
    %172 = arith.mulf %162, %164 : vector<2x32xf32>
    %173 = arith.addf %171, %172 : vector<2x32xf32>
    %174 = math.tanh %173 : vector<2x32xf32>
    %175 = arith.mulf %170, %174 : vector<2x32xf32>
    %c4 = arith.constant 4 : index
    %c0_52 = arith.constant 0 : index
    %c0_53 = arith.constant 0 : index
    %176 = vector.load %arg7[%c4, %c0_52, %c0_53] : memref<8x2x64xf32, #tpu.memory_space<vmem>>, vector<1x2x32xf32>
    %177 = vector.shape_cast %176 : vector<1x2x32xf32> to vector<2x32xf32>
    %178 = vector.shape_cast %175 : vector<2x32xf32> to vector<1x2x32xf32>
    tpu.vector_store %arg7[%c4, %c0_52, %c0_53], %178 {strides = array<i32>} : memref<8x2x64xf32, #tpu.memory_space<vmem>>, vector<1x2x32xf32>,
    %c4_54 = arith.constant 4 : index
    %c0_55 = arith.constant 0 : index
    %c32_56 = arith.constant 32 : index
    %179 = vector.load %arg7[%c4_54, %c0_55, %c32_56] : memref<8x2x64xf32, #tpu.memory_space<vmem>>, vector<1x2x32xf32>
    %180 = vector.shape_cast %179 : vector<1x2x32xf32> to vector<2x32xf32>
    %181 = vector.shape_cast %173 : vector<2x32xf32> to vector<1x2x32xf32>
    tpu.vector_store %arg7[%c4_54, %c0_55, %c32_56], %181 {strides = array<i32>} : memref<8x2x64xf32, #tpu.memory_space<vmem>>, vector<1x2x32xf32>,
    %182 = vector.extract_strided_slice %8 {offsets = [10, 0], sizes = [2, 128], strides = [1, 1]} : vector<16x128xf32> to vector<2x128xf32>
    %cst_57 = arith.constant dense<0.000000e+00> : vector<2x128xf32>
    %183 = tpu.matmul %175, %9, %cst_57 {dimension_numbers = #tpu.dot_dimension_numbers<[1], [0], [0], [1], [0, 0, 1, 1], [], []>} : vector<2x32xf32>, vector<32x128xf32>, vector<2x128xf32> -> vector<2x128xf32>
    %184 = arith.addf %182, %183 : vector<2x128xf32>
    %185 = vector.extract_strided_slice %184 {offsets = [0, 0], sizes = [2, 32], strides = [1, 1]} : vector<2x128xf32> to vector<2x32xf32>
    %186 = arith.negf %185 : vector<2x32xf32>
    %187 = math.exp %186 : vector<2x32xf32>
    %cst_58 = arith.constant 1.000000e+00 : f32
    %188 = vector.broadcast %cst_58 : f32 to vector<2x32xf32>
    %189 = arith.addf %188, %187 : vector<2x32xf32>
    %190 = arith.divf %188, %189 : vector<2x32xf32>
    %191 = vector.extract_strided_slice %184 {offsets = [0, 32], sizes = [2, 32], strides = [1, 1]} : vector<2x128xf32> to vector<2x32xf32>
    %192 = arith.negf %191 : vector<2x32xf32>
    %193 = math.exp %192 : vector<2x32xf32>
    %cst_59 = arith.constant 1.000000e+00 : f32
    %194 = vector.broadcast %cst_59 : f32 to vector<2x32xf32>
    %195 = arith.addf %194, %193 : vector<2x32xf32>
    %196 = arith.divf %194, %195 : vector<2x32xf32>
    %197 = vector.extract_strided_slice %184 {offsets = [0, 64], sizes = [2, 32], strides = [1, 1]} : vector<2x128xf32> to vector<2x32xf32>
    %198 = math.tanh %197 : vector<2x32xf32>
    %199 = vector.extract_strided_slice %184 {offsets = [0, 96], sizes = [2, 32], strides = [1, 1]} : vector<2x128xf32> to vector<2x32xf32>
    %200 = arith.negf %199 : vector<2x32xf32>
    %201 = math.exp %200 : vector<2x32xf32>
    %cst_60 = arith.constant 1.000000e+00 : f32
    %202 = vector.broadcast %cst_60 : f32 to vector<2x32xf32>
    %203 = arith.addf %202, %201 : vector<2x32xf32>
    %204 = arith.divf %202, %203 : vector<2x32xf32>
    %205 = arith.mulf %190, %173 : vector<2x32xf32>
    %206 = arith.mulf %196, %198 : vector<2x32xf32>
    %207 = arith.addf %205, %206 : vector<2x32xf32>
    %208 = math.tanh %207 : vector<2x32xf32>
    %209 = arith.mulf %204, %208 : vector<2x32xf32>
    %c5 = arith.constant 5 : index
    %c0_61 = arith.constant 0 : index
    %c0_62 = arith.constant 0 : index
    %210 = vector.load %arg7[%c5, %c0_61, %c0_62] : memref<8x2x64xf32, #tpu.memory_space<vmem>>, vector<1x2x32xf32>
    %211 = vector.shape_cast %210 : vector<1x2x32xf32> to vector<2x32xf32>
    %212 = vector.shape_cast %209 : vector<2x32xf32> to vector<1x2x32xf32>
    tpu.vector_store %arg7[%c5, %c0_61, %c0_62], %212 {strides = array<i32>} : memref<8x2x64xf32, #tpu.memory_space<vmem>>, vector<1x2x32xf32>,
    %c5_63 = arith.constant 5 : index
    %c0_64 = arith.constant 0 : index
    %c32_65 = arith.constant 32 : index
    %213 = vector.load %arg7[%c5_63, %c0_64, %c32_65] : memref<8x2x64xf32, #tpu.memory_space<vmem>>, vector<1x2x32xf32>
    %214 = vector.shape_cast %213 : vector<1x2x32xf32> to vector<2x32xf32>
    %215 = vector.shape_cast %207 : vector<2x32xf32> to vector<1x2x32xf32>
    tpu.vector_store %arg7[%c5_63, %c0_64, %c32_65], %215 {strides = array<i32>} : memref<8x2x64xf32, #tpu.memory_space<vmem>>, vector<1x2x32xf32>,
    %216 = vector.extract_strided_slice %8 {offsets = [12, 0], sizes = [2, 128], strides = [1, 1]} : vector<16x128xf32> to vector<2x128xf32>
    %cst_66 = arith.constant dense<0.000000e+00> : vector<2x128xf32>
    %217 = tpu.matmul %209, %9, %cst_66 {dimension_numbers = #tpu.dot_dimension_numbers<[1], [0], [0], [1], [0, 0, 1, 1], [], []>} : vector<2x32xf32>, vector<32x128xf32>, vector<2x128xf32> -> vector<2x128xf32>
    %218 = arith.addf %216, %217 : vector<2x128xf32>
    %219 = vector.extract_strided_slice %218 {offsets = [0, 0], sizes = [2, 32], strides = [1, 1]} : vector<2x128xf32> to vector<2x32xf32>
    %220 = arith.negf %219 : vector<2x32xf32>
    %221 = math.exp %220 : vector<2x32xf32>
    %cst_67 = arith.constant 1.000000e+00 : f32
    %222 = vector.broadcast %cst_67 : f32 to vector<2x32xf32>
    %223 = arith.addf %222, %221 : vector<2x32xf32>
    %224 = arith.divf %222, %223 : vector<2x32xf32>
    %225 = vector.extract_strided_slice %218 {offsets = [0, 32], sizes = [2, 32], strides = [1, 1]} : vector<2x128xf32> to vector<2x32xf32>
    %226 = arith.negf %225 : vector<2x32xf32>
    %227 = math.exp %226 : vector<2x32xf32>
    %cst_68 = arith.constant 1.000000e+00 : f32
    %228 = vector.broadcast %cst_68 : f32 to vector<2x32xf32>
    %229 = arith.addf %228, %227 : vector<2x32xf32>
    %230 = arith.divf %228, %229 : vector<2x32xf32>
    %231 = vector.extract_strided_slice %218 {offsets = [0, 64], sizes = [2, 32], strides = [1, 1]} : vector<2x128xf32> to vector<2x32xf32>
    %232 = math.tanh %231 : vector<2x32xf32>
    %233 = vector.extract_strided_slice %218 {offsets = [0, 96], sizes = [2, 32], strides = [1, 1]} : vector<2x128xf32> to vector<2x32xf32>
    %234 = arith.negf %233 : vector<2x32xf32>
    %235 = math.exp %234 : vector<2x32xf32>
    %cst_69 = arith.constant 1.000000e+00 : f32
    %236 = vector.broadcast %cst_69 : f32 to vector<2x32xf32>
    %237 = arith.addf %236, %235 : vector<2x32xf32>
    %238 = arith.divf %236, %237 : vector<2x32xf32>
    %239 = arith.mulf %224, %207 : vector<2x32xf32>
    %240 = arith.mulf %230, %232 : vector<2x32xf32>
    %241 = arith.addf %239, %240 : vector<2x32xf32>
    %242 = math.tanh %241 : vector<2x32xf32>
    %243 = arith.mulf %238, %242 : vector<2x32xf32>
    %c6 = arith.constant 6 : index
    %c0_70 = arith.constant 0 : index
    %c0_71 = arith.constant 0 : index
    %244 = vector.load %arg7[%c6, %c0_70, %c0_71] : memref<8x2x64xf32, #tpu.memory_space<vmem>>, vector<1x2x32xf32>
    %245 = vector.shape_cast %244 : vector<1x2x32xf32> to vector<2x32xf32>
    %246 = vector.shape_cast %243 : vector<2x32xf32> to vector<1x2x32xf32>
    tpu.vector_store %arg7[%c6, %c0_70, %c0_71], %246 {strides = array<i32>} : memref<8x2x64xf32, #tpu.memory_space<vmem>>, vector<1x2x32xf32>,
    %c6_72 = arith.constant 6 : index
    %c0_73 = arith.constant 0 : index
    %c32_74 = arith.constant 32 : index
    %247 = vector.load %arg7[%c6_72, %c0_73, %c32_74] : memref<8x2x64xf32, #tpu.memory_space<vmem>>, vector<1x2x32xf32>
    %248 = vector.shape_cast %247 : vector<1x2x32xf32> to vector<2x32xf32>
    %249 = vector.shape_cast %241 : vector<2x32xf32> to vector<1x2x32xf32>
    tpu.vector_store %arg7[%c6_72, %c0_73, %c32_74], %249 {strides = array<i32>} : memref<8x2x64xf32, #tpu.memory_space<vmem>>, vector<1x2x32xf32>,
    %250 = vector.extract_strided_slice %8 {offsets = [14, 0], sizes = [2, 128], strides = [1, 1]} : vector<16x128xf32> to vector<2x128xf32>
    %cst_75 = arith.constant dense<0.000000e+00> : vector<2x128xf32>
    %251 = tpu.matmul %243, %9, %cst_75 {dimension_numbers = #tpu.dot_dimension_numbers<[1], [0], [0], [1], [0, 0, 1, 1], [], []>} : vector<2x32xf32>, vector<32x128xf32>, vector<2x128xf32> -> vector<2x128xf32>
    %252 = arith.addf %250, %251 : vector<2x128xf32>
    %253 = vector.extract_strided_slice %252 {offsets = [0, 0], sizes = [2, 32], strides = [1, 1]} : vector<2x128xf32> to vector<2x32xf32>
    %254 = arith.negf %253 : vector<2x32xf32>
    %255 = math.exp %254 : vector<2x32xf32>
    %cst_76 = arith.constant 1.000000e+00 : f32
    %256 = vector.broadcast %cst_76 : f32 to vector<2x32xf32>
    %257 = arith.addf %256, %255 : vector<2x32xf32>
    %258 = arith.divf %256, %257 : vector<2x32xf32>
    %259 = vector.extract_strided_slice %252 {offsets = [0, 32], sizes = [2, 32], strides = [1, 1]} : vector<2x128xf32> to vector<2x32xf32>
    %260 = arith.negf %259 : vector<2x32xf32>
    %261 = math.exp %260 : vector<2x32xf32>
    %cst_77 = arith.constant 1.000000e+00 : f32
    %262 = vector.broadcast %cst_77 : f32 to vector<2x32xf32>
    %263 = arith.addf %262, %261 : vector<2x32xf32>
    %264 = arith.divf %262, %263 : vector<2x32xf32>
    %265 = vector.extract_strided_slice %252 {offsets = [0, 64], sizes = [2, 32], strides = [1, 1]} : vector<2x128xf32> to vector<2x32xf32>
    %266 = math.tanh %265 : vector<2x32xf32>
    %267 = vector.extract_strided_slice %252 {offsets = [0, 96], sizes = [2, 32], strides = [1, 1]} : vector<2x128xf32> to vector<2x32xf32>
    %268 = arith.negf %267 : vector<2x32xf32>
    %269 = math.exp %268 : vector<2x32xf32>
    %cst_78 = arith.constant 1.000000e+00 : f32
    %270 = vector.broadcast %cst_78 : f32 to vector<2x32xf32>
    %271 = arith.addf %270, %269 : vector<2x32xf32>
    %272 = arith.divf %270, %271 : vector<2x32xf32>
    %273 = arith.mulf %258, %241 : vector<2x32xf32>
    %274 = arith.mulf %264, %266 : vector<2x32xf32>
    %275 = arith.addf %273, %274 : vector<2x32xf32>
    %276 = math.tanh %275 : vector<2x32xf32>
    %277 = arith.mulf %272, %276 : vector<2x32xf32>
    %c7 = arith.constant 7 : index
    %c0_79 = arith.constant 0 : index
    %c0_80 = arith.constant 0 : index
    %278 = vector.load %arg7[%c7, %c0_79, %c0_80] : memref<8x2x64xf32, #tpu.memory_space<vmem>>, vector<1x2x32xf32>
    %279 = vector.shape_cast %278 : vector<1x2x32xf32> to vector<2x32xf32>
    %280 = vector.shape_cast %277 : vector<2x32xf32> to vector<1x2x32xf32>
    tpu.vector_store %arg7[%c7, %c0_79, %c0_80], %280 {strides = array<i32>} : memref<8x2x64xf32, #tpu.memory_space<vmem>>, vector<1x2x32xf32>,
    %c7_81 = arith.constant 7 : index
    %c0_82 = arith.constant 0 : index
    %c32_83 = arith.constant 32 : index
    %281 = vector.load %arg7[%c7_81, %c0_82, %c32_83] : memref<8x2x64xf32, #tpu.memory_space<vmem>>, vector<1x2x32xf32>
    %282 = vector.shape_cast %281 : vector<1x2x32xf32> to vector<2x32xf32>
    %283 = vector.shape_cast %275 : vector<2x32xf32> to vector<1x2x32xf32>
    tpu.vector_store %arg7[%c7_81, %c0_82, %c32_83], %283 {strides = array<i32>} : memref<8x2x64xf32, #tpu.memory_space<vmem>>, vector<1x2x32xf32>,
    %c0_84 = arith.constant 0 : index
    %c0_85 = arith.constant 0 : index
    %284 = vector.load %arg8[%c0_84, %c0_85] : memref<2x32xf32, #tpu.memory_space<vmem>>, vector<2x32xf32>
    tpu.vector_store %arg8[%c0_84, %c0_85], %277 {strides = array<i32>} : memref<2x32xf32, #tpu.memory_space<vmem>>, vector<2x32xf32>,
    %c0_86 = arith.constant 0 : index
    %c0_87 = arith.constant 0 : index
    %285 = vector.load %arg9[%c0_86, %c0_87] : memref<2x32xf32, #tpu.memory_space<vmem>>, vector<2x32xf32>
    tpu.vector_store %arg9[%c0_86, %c0_87], %275 {strides = array<i32>} : memref<2x32xf32, #tpu.memory_space<vmem>>, vector<2x32xf32>,
    return
  }
  func.func @transform_0(%arg0: i32) -> (i32, i32) {
    %c0_i32 = arith.constant 0 : i32
    %c0_i32_0 = arith.constant 0 : i32
    return %arg0, %c0_i32 : i32, i32
  }
  func.func @transform_1(%arg0: i32) -> (i32, i32) {
    %c0_i32 = arith.constant 0 : i32
    %c0_i32_0 = arith.constant 0 : i32
    %c0_i32_1 = arith.constant 0 : i32
    return %c0_i32, %c0_i32_0 : i32, i32
  }
  func.func @transform_2(%arg0: i32) -> (i32, i32) {
    %c0_i32 = arith.constant 0 : i32
    %c0_i32_0 = arith.constant 0 : i32
    %c0_i32_1 = arith.constant 0 : i32
    return %c0_i32, %c0_i32_0 : i32, i32
  }
  func.func @transform_3(%arg0: i32) -> (i32, i32) {
    %c0_i32 = arith.constant 0 : i32
    %c0_i32_0 = arith.constant 0 : i32
    %c0_i32_1 = arith.constant 0 : i32
    return %c0_i32, %c0_i32_0 : i32, i32
  }
  func.func @transform_4(%arg0: i32) -> (i32, i32) {
    %c0_i32 = arith.constant 0 : i32
    %c0_i32_0 = arith.constant 0 : i32
    %c0_i32_1 = arith.constant 0 : i32
    return %c0_i32, %c0_i32_0 : i32, i32
  }
  func.func @transform_5(%arg0: i32) -> (i32, i32) {
    %c0_i32 = arith.constant 0 : i32
    %c0_i32_0 = arith.constant 0 : i32
    %c0_i32_1 = arith.constant 0 : i32
    return %c0_i32, %c0_i32_0 : i32, i32
  }
  func.func @transform_6(%arg0: i32) -> (i32, i32, i32) {
    %c0_i32 = arith.constant 0 : i32
    %c0_i32_0 = arith.constant 0 : i32
    %c0_i32_1 = arith.constant 0 : i32
    return %arg0, %c0_i32, %c0_i32_0 : i32, i32, i32
  }
}

</mosaic_0001>

<llo_original>
// kernel: tpu_custom_call.1
$region0: #{tpu_custom_call.1}
  #allocation0 [shape = 'u32[]', space=smem, size = 0x4, offset = 0x4, fixed_abs, tag = 'smem constant byte address 0x4 - core index']
  #allocation1 [shape = 'u32[72,128]{1,0:T(1,128)}', space=vmem, size = 0x9000, scoped, tag = 'internal scratch']
  #allocation2 [shape = 'f32[2,32]{1,0:T(2,128)}', space=vmem, size = 0x400, scoped, tag = 'scratch operand']
  #allocation3 [shape = 'f32[2,32]{1,0:T(2,128)}', space=vmem, size = 0x400, scoped, tag = 'scratch operand']
  %s0 = inlined_call_operand.hbm [shape: f32[16,16], index: 0, kind: input, shape index: {}]
  %s1 = inlined_call_operand.hbm [shape: f32[16,128], index: 1, kind: input, shape index: {}]
  %s2 = inlined_call_operand.hbm [shape: f32[32,128], index: 2, kind: input, shape index: {}]
  %s3 = inlined_call_operand.hbm [shape: f32[1,128], index: 3, kind: input, shape index: {}]
  %s4 = inlined_call_operand.vmem [shape: f32[2,32], index: 4, kind: input, shape index: {}]
  %s5 = inlined_call_operand.vmem [shape: f32[2,32], index: 5, kind: input, shape index: {}]
  %s6 = inlined_call_operand.hbm [shape: f32[8,2,64], index: 6, kind: output, shape index: {}]
  %s7 = sld [smem:[#allocation0]]
  $region54: #{tpu_custom_call.1} parent=0
    _
  %s9 = ssub.s32 1, %s7
  %s10 = scalar_select 0, %s9, %s7
  $region1: #{tpu_custom_call.1} parent=0
    #allocation4 [shape = 'u8[8192]{0}', space=vmem, size = 0x2000, scoped, tag = 'input window, operand 0, single buffered']
    #allocation5 [shape = 's32[1]{0}', space=sflag, size = 0x4, scoped, tag = 'scoped memory for tpu_custom_call.1']
    #allocation6 [shape = 's32[1]{0}', space=sflag, size = 0x4, scoped, tag = 'scoped memory for tpu_custom_call.1']
    #allocation7 [shape = 'u8[8192]{0}', space=vmem, size = 0x2000, scoped, tag = 'input window, operand 1, single buffered']
    #allocation8 [shape = 's32[1]{0}', space=sflag, size = 0x4, scoped, tag = 'scoped memory for tpu_custom_call.1']
    #allocation9 [shape = 'u8[16384]{0}', space=vmem, size = 0x4000, scoped, tag = 'input window, operand 2, single buffered']
    #allocation10 [shape = 'u8[512]{0}', space=vmem, size = 0x400, scoped, tag = 'input window, operand 3, single buffered']
    #allocation11 [shape = 's32[1]{0}', space=sflag, size = 0x4, scoped, tag = 'scoped memory for tpu_custom_call.1']
    #allocation12 [shape = 'u8[8192]{0}', space=vmem, size = 0x2000, scoped, tag = 'output window, operand 0, single buffered']
    %11 = vsyncpa [#allocation5], 0
    %12 = vsyncpa [#allocation8], 0
    %13 = vsyncpa [#allocation11], 0
    %14 = vsyncpa [#allocation6], 0
    // Predicated region
    $region2: #{tpu_custom_call.1} parent=1 // pred_check
      _
    $region3: #{tpu_custom_call.1} parent=1 // pred_check_branch
      %16 = sbr.rel (0) target = $region5
    $region4: #{tpu_custom_call.1} parent=1 // pred_region
      %18 = vsyncadd [#allocation5], 0
      %s19 = sshll.u32 %s0, 4
      %s20 = int_to_ptr.hbm [resolvable:$true] %s19
      %s21 = sshll.u32 [#allocation4], 4
      %s22 = int_to_ptr.vmem [resolvable:$true] %s21
      %27 = dma.hbm_to_vmem [thread:$0]  %s20, 256, %s22, [#allocation5], 128, 128, 8
    $region5: #{tpu_custom_call.1} parent=1 // pred_fallthru
      _
    // Predicated region
    $region6: #{tpu_custom_call.1} parent=1 // pred_check
      _
    $region7: #{tpu_custom_call.1} parent=1 // pred_check_branch
      %29 = sbr.rel (0) target = $region9
    $region8: #{tpu_custom_call.1} parent=1 // pred_region
      %31 = vsyncadd [#allocation8], 0
      %s32 = sshll.u32 %s1, 4
      %s33 = int_to_ptr.hbm [resolvable:$true] %s32
      %s34 = sshll.u32 [#allocation7], 4
      %s35 = int_to_ptr.vmem [resolvable:$true] %s34
      %40 = dma.hbm_to_vmem [thread:$0]  %s33, 256, %s35, [#allocation8], 128, 128, 8
    $region9: #{tpu_custom_call.1} parent=1 // pred_fallthru
      _
    // Predicated region
    $region10: #{tpu_custom_call.1} parent=1 // pred_check
      _
    $region11: #{tpu_custom_call.1} parent=1 // pred_check_branch
      %42 = sbr.rel (0) target = $region13
    $region12: #{tpu_custom_call.1} parent=1 // pred_region
      %44 = vsyncadd [#allocation8], 0
      %s45 = sshll.u32 %s2, 4
      %s46 = int_to_ptr.hbm [resolvable:$true] %s45
      %s47 = sshll.u32 [#allocation9], 4
      %s48 = int_to_ptr.vmem [resolvable:$true] %s47
      %53 = dma.hbm_to_vmem [thread:$0]  %s46, 512, %s48, [#allocation8], 128, 128, 8
    $region13: #{tpu_custom_call.1} parent=1 // pred_fallthru
      _
    // Predicated region
    $region14: #{tpu_custom_call.1} parent=1 // pred_check
      _
    $region15: #{tpu_custom_call.1} parent=1 // pred_check_branch
      %55 = sbr.rel (0) target = $region17
    $region16: #{tpu_custom_call.1} parent=1 // pred_region
      %57 = vsyncadd [#allocation11], 0
      %s59 = sshll.u32 %s3, 4
      %s60 = int_to_ptr.hbm [resolvable:$true] %s59
      %s61 = sshll.u32 [#allocation10], 4
      %s62 = int_to_ptr.vmem [resolvable:$true] %s61
      %64 = dma.hbm_to_vmem [thread:$0]  %s60, 16, %s62, [#allocation11]
    $region17: #{tpu_custom_call.1} parent=1 // pred_fallthru
      _
    // Predicated region
    $region18: #{tpu_custom_call.1} parent=1 // pred_check
      _
    $region19: #{tpu_custom_call.1} parent=1 // pred_check_branch
      %66 = sbr.rel (0) target = $region21
    $region20: #{tpu_custom_call.1} parent=1 // pred_region
      _
    $region21: #{tpu_custom_call.1} parent=1 // pred_fallthru
      _
    // Predicated region
    $region22: #{tpu_custom_call.1} parent=1 // pred_check
      _
    $region23: #{tpu_custom_call.1} parent=1 // pred_check_branch
      %68 = sbr.rel (0) target = $region25
    $region24: #{tpu_custom_call.1} parent=1 // pred_region
      _
    $region25: #{tpu_custom_call.1} parent=1 // pred_fallthru
      _
    // Predicated region
    $region26: #{tpu_custom_call.1} parent=1 // pred_check
      _
    $region27: #{tpu_custom_call.1} parent=1 // pred_check_branch
      %70 = sbr.rel (0) target = $region29
    $region28: #{tpu_custom_call.1} parent=1 // pred_region
      %72 = dma.done [#allocation5], 256
    $region29: #{tpu_custom_call.1} parent=1 // pred_fallthru
      _
    // Predicated region
    $region30: #{tpu_custom_call.1} parent=1 // pred_check
      _
    $region31: #{tpu_custom_call.1} parent=1 // pred_check_branch
      %74 = sbr.rel (0) target = $region33
    $region32: #{tpu_custom_call.1} parent=1 // pred_region
      %76 = dma.done [#allocation8], 256
    $region33: #{tpu_custom_call.1} parent=1 // pred_fallthru
      _
    // Predicated region
    $region34: #{tpu_custom_call.1} parent=1 // pred_check
      _
    $region35: #{tpu_custom_call.1} parent=1 // pred_check_branch
      %78 = sbr.rel (0) target = $region37
    $region36: #{tpu_custom_call.1} parent=1 // pred_region
      %80 = dma.done [#allocation8], 512
    $region37: #{tpu_custom_call.1} parent=1 // pred_fallthru
      _
    // Predicated region
    $region38: #{tpu_custom_call.1} parent=1 // pred_check
      _
    $region39: #{tpu_custom_call.1} parent=1 // pred_check_branch
      %82 = sbr.rel (0) target = $region41
    $region40: #{tpu_custom_call.1} parent=1 // pred_region
      %84 = dma.done [#allocation11], 16
    $region41: #{tpu_custom_call.1} parent=1 // pred_fallthru
      _
    %p85 = scmp.eq.s32.totalorder 0, 0
    // Predicated region
    $region42: #{tpu_custom_call.1} parent=1 // pred_check
      %p86 = pneg %p85
    $region43: #{tpu_custom_call.1} parent=1 // pred_check_branch
      %88 = sbr.rel (%p86) target = $region45
    $region44: #{tpu_custom_call.1} parent=1 // pred_region
      %v89 = vld [vmem:[%s4] sm:$0x3]
      %vm90 = vcmask 254976
      %91 = vst.msk [vmem:[#allocation2] sm:$0x3] %vm90, %v89
      %v92 = vld [vmem:[%s5] sm:$0x3]
      %93 = vst.msk [vmem:[#allocation3] sm:$0x3] %vm90, %v92
    $region45: #{tpu_custom_call.1} parent=1 // pred_fallthru
      _
    %v94 = vld [vmem:[#allocation4] sm:$0xff]
    %v95 = vld [vmem:[#allocation4 + $0x8] sm:$0xff]
    %v96 = vld [vmem:[#allocation7] sm:$0xff]
    %v97 = vld [vmem:[#allocation7 + $0x8] sm:$0xff]
    %v98 = vld [vmem:[#allocation10] sm:$0x1]
    %v100 = vperm.slane %v98, 0
    %vm102 = vcmask 130048
    %v104 = vsel %vm102, %v94, 0
    %v107 = vsel %vm102, %v95, 0
    %109 = vmatpush.msra.mxu0 0.0
    %110 = vmatpush.msra.mxu0 0.0
    %111 = vmatpush.msra.mxu0 0.0
    %112 = vmatpush.msra.mxu0 0.0
    %113 = vmatpush.msra.mxu0 0.0
    %114 = vmatpush.msra.mxu0 0.0
    %115 = vmatpush.msra.mxu0 0.0
    %116 = vmatpush.msra.mxu0 0.0
    %117 = vmatpush.msra.mxu0 0.0
    %118 = vmatpush.msra.mxu0 0.0
    %119 = vmatpush.msra.mxu0 0.0
    %120 = vmatpush.msra.mxu0 0.0
    %121 = vmatpush.msra.mxu0 0.0
    %122 = vmatpush.msra.mxu0 0.0
    %123 = vmatpush.msra.mxu0 %v97
    %124 = vmatpush.msra.mxu0 %v96
    %125 = vmatmul.f32.gmra.mxu0 %v104
    %v126 = vpop.f32.mrf.mxu0
    %v127 = vadd.f32 %v100, %v126
    %128 = vmatmul.f32.gmra.mxu0 %v107
    %v129 = vpop.f32.mrf.mxu0
    %v130 = vadd.f32 %v100, %v129
    %131 = vdwg.mxu0
    %v132 = vld [vmem:[#allocation9] sm:$0xff]
    %v133 = vld [vmem:[#allocation9 + $0x8] sm:$0xff]
    %v134 = vld [vmem:[#allocation9 + $0x10] sm:$0xff]
    %v135 = vld [vmem:[#allocation9 + $0x18] sm:$0xff]
    %v136 = vld [vmem:[#allocation2] sm:$0x3]
    %v137 = vld [vmem:[#allocation3] sm:$0x3]
    %vm138 = vcmask 261120
    %v140 = vsel %vm138, %v136, 0
    %142 = vmatpush.msra.mxu0 0.0
    %143 = vmatpush.msra.mxu0 0.0
    %144 = vmatpush.msra.mxu0 0.0
    %145 = vmatpush.msra.mxu0 0.0
    %146 = vmatpush.msra.mxu0 0.0
    %147 = vmatpush.msra.mxu0 0.0
    %148 = vmatpush.msra.mxu0 0.0
    %149 = vmatpush.msra.mxu0 0.0
    %150 = vmatpush.msra.mxu0 0.0
    %151 = vmatpush.msra.mxu0 0.0
    %152 = vmatpush.msra.mxu0 0.0
    %153 = vmatpush.msra.mxu0 0.0
    %154 = vmatpush.msra.mxu0 %v135
    %155 = vmatpush.msra.mxu0 %v134
    %156 = vmatpush.msra.mxu0 %v133
    %157 = vmatpush.msra.mxu0 %v132
    %158 = vmatmul.f32.gmra.mxu0 %v140
    %v159 = vpop.f32.mrf.mxu0
    %v160 = vadd.f32 0.0, %v159
    %161 = vdwg.mxu0
    %v162 = vadd.f32 %v127, %v160
    %v163 = vxor.u32 %v162, 2147483648
    %v164 = vmul.f32 %v163, 1.442695
    %v165 = vpow.pop %v164
    %v166 = vadd.f32 %v165, 1.0
    %v167 = vrcp.pop %v166
    %v168 = vmul.f32 %v166, %v167
    %v169 = vsub.f32 1.0, %v168
    %v170 = vmul.f32 %v167, %v169
    %v171 = vadd.f32 %v167, %v170
    %vm172 = vweird.f32 %v166
    %vm173 = vweird.f32 %v167
    %vm174 = vmor %vm172, %vm173
    %v175 = vsel %vm174, %v167, %v171
    %v176 = vand.u32 2147483647, %v166
    %vm177 = vcmp.eq.f32.partialorder %v176, 8.507059e+37
    %v178 = vand.u32 %v166, 2147483648
    %v179 = vor.u32 1.1754944e-38, %v178
    %v180 = vsel %vm177, %v179, %v175
    %v181 = vmul.f32 1.0, %v180
    %v182 = vtanh.pop %v162
    %v183 = vmul.f32 %v181, %v137
    %185 = vrot.lane.b32.xlu0 %v182, 96
    %v186 = vpop.permute.xlu0 %185
    %v188 = vmul.f32 %v181, %v186
    %190 = vrot.lane.b32.xlu0 %v188, 96
    %v191 = vpop.permute.xlu0 %190
    %v193 = vadd.f32 %v183, %v191
    %v194 = vtanh.pop %v193
    %196 = vrot.lane.b32.xlu0 %v194, 96
    %v197 = vpop.permute.xlu0 %196
    %v199 = vmul.f32 %v181, %v197
    %201 = vrot.lane.b32.xlu0 %v199, 32
    %v202 = vpop.permute.xlu0 %201
    %vm204 = vcmask 254976
    %205 = vst.msk [vmem:[#allocation12] sm:$0x3] %vm204, %v202
    %207 = vrot.lane.b32.xlu0 %v193, 32
    %v208 = vpop.permute.xlu0 %207
    %vm210 = vcmask 517376
    %211 = vst.msk [vmem:[#allocation12] sm:$0x3] %vm210, %v208
    %v212 = vsel %vm138, %v202, 0
    %214 = vmatpush.msra.mxu0 0.0
    %215 = vmatpush.msra.mxu0 0.0
    %216 = vmatpush.msra.mxu0 0.0
    %217 = vmatpush.msra.mxu0 0.0
    %218 = vmatpush.msra.mxu0 0.0
    %219 = vmatpush.msra.mxu0 0.0
    %220 = vmatpush.msra.mxu0 0.0
    %221 = vmatpush.msra.mxu0 0.0
    %222 = vmatpush.msra.mxu0 0.0
    %223 = vmatpush.msra.mxu0 0.0
    %224 = vmatpush.msra.mxu0 0.0
    %225 = vmatpush.msra.mxu0 0.0
    %226 = vmatpush.msra.mxu0 %v135
    %227 = vmatpush.msra.mxu0 %v134
    %228 = vmatpush.msra.mxu0 %v133
    %229 = vmatpush.msra.mxu0 %v132
    %230 = vmatmul.f32.gmra.mxu0 %v212
    %v231 = vpop.f32.mrf.mxu0
    %v232 = vadd.f32 0.0, %v231
    %233 = vdwg.mxu0
    %v235 = vrot.slane %v232, 6
    %v237 = vadd.f32 %v127, %v235
    %v238 = vxor.u32 %v237, 2147483648
    %v239 = vmul.f32 %v238, 1.442695
    %v240 = vpow.pop %v239
    %v241 = vadd.f32 %v240, 1.0
    %v242 = vrcp.pop %v241
    %v243 = vmul.f32 %v241, %v242
    %v244 = vsub.f32 1.0, %v243
    %v245 = vmul.f32 %v242, %v244
    %v246 = vadd.f32 %v242, %v245
    %vm247 = vweird.f32 %v241
    %vm248 = vweird.f32 %v242
    %vm249 = vmor %vm247, %vm248
    %v250 = vsel %vm249, %v242, %v246
    %v251 = vand.u32 2147483647, %v241
    %vm252 = vcmp.eq.f32.partialorder %v251, 8.507059e+37
    %v253 = vand.u32 %v241, 2147483648
    %v254 = vor.u32 1.1754944e-38, %v253
    %v255 = vsel %vm252, %v254, %v250
    %v256 = vmul.f32 1.0, %v255
    %v257 = vtanh.pop %v237
    %v258 = vrot.slane %v193, 6
    %v260 = vmul.f32 %v256, %v258
    %262 = vrot.lane.b32.xlu0 %v257, 96
    %v263 = vpop.permute.xlu0 %262
    %v265 = vmul.f32 %v256, %v263
    %267 = vrot.lane.b32.xlu0 %v265, 96
    %v268 = vpop.permute.xlu0 %267
    %v270 = vadd.f32 %v260, %v268
    %v271 = vtanh.pop %v270
    %273 = vrot.lane.b32.xlu0 %v271, 96
    %v274 = vpop.permute.xlu0 %273
    %v276 = vmul.f32 %v256, %v274
    %278 = vrot.lane.b32.xlu0 %v276, 32
    %v279 = vpop.permute.xlu0 %278
    %s281 = scalar_lea.vmem [#allocation12], 2
    %vm282 = vcmask 257026
    %283 = vst.msk [vmem:[%s281 - $0x2] sm:$0xc] %vm282, %v279
    %285 = vrot.lane.b32.xlu0 %v270, 32
    %v286 = vpop.permute.xlu0 %285
    %vm288 = vcmask 519426
    %289 = vst.msk [vmem:[%s281 - $0x2] sm:$0xc] %vm288, %v286
    %v290 = vrot.slane %v276, 2
    %291 = vrot.lane.b32.xlu0 %v290, 32
    %v292 = vpop.permute.xlu0 %291
    %v293 = vsel %vm138, %v292, 0
    %295 = vmatpush.msra.mxu0 0.0
    %296 = vmatpush.msra.mxu0 0.0
    %297 = vmatpush.msra.mxu0 0.0
    %298 = vmatpush.msra.mxu0 0.0
    %299 = vmatpush.msra.mxu0 0.0
    %300 = vmatpush.msra.mxu0 0.0
    %301 = vmatpush.msra.mxu0 0.0
    %302 = vmatpush.msra.mxu0 0.0
    %303 = vmatpush.msra.mxu0 0.0
    %304 = vmatpush.msra.mxu0 0.0
    %305 = vmatpush.msra.mxu0 0.0
    %306 = vmatpush.msra.mxu0 0.0
    %307 = vmatpush.msra.mxu0 %v135
    %308 = vmatpush.msra.mxu0 %v134
    %309 = vmatpush.msra.mxu0 %v133
    %310 = vmatpush.msra.mxu0 %v132
    %311 = vmatmul.f32.gmra.mxu0 %v293
    %v312 = vpop.f32.mrf.mxu0
    %v313 = vadd.f32 0.0, %v312
    %314 = vdwg.mxu0
    %v316 = vrot.slane %v313, 4
    %v318 = vadd.f32 %v127, %v316
    %v319 = vxor.u32 %v318, 2147483648
    %v320 = vmul.f32 %v319, 1.442695
    %v321 = vpow.pop %v320
    %v322 = vadd.f32 %v321, 1.0
    %v323 = vrcp.pop %v322
    %v324 = vmul.f32 %v322, %v323
    %v325 = vsub.f32 1.0, %v324
    %v326 = vmul.f32 %v323, %v325
    %v327 = vadd.f32 %v323, %v326
    %vm328 = vweird.f32 %v322
    %vm329 = vweird.f32 %v323
    %vm330 = vmor %vm328, %vm329
    %v331 = vsel %vm330, %v323, %v327
    %v332 = vand.u32 2147483647, %v322
    %vm333 = vcmp.eq.f32.partialorder %v332, 8.507059e+37
    %v334 = vand.u32 %v322, 2147483648
    %v335 = vor.u32 1.1754944e-38, %v334
    %v336 = vsel %vm333, %v335, %v331
    %v337 = vmul.f32 1.0, %v336
    %v338 = vtanh.pop %v318
    %v339 = vrot.slane %v270, 6
    %v341 = vmul.f32 %v337, %v339
    %343 = vrot.lane.b32.xlu0 %v338, 96
    %v344 = vpop.permute.xlu0 %343
    %v346 = vmul.f32 %v337, %v344
    %348 = vrot.lane.b32.xlu0 %v346, 96
    %v349 = vpop.permute.xlu0 %348
    %v351 = vadd.f32 %v341, %v349
    %v352 = vtanh.pop %v351
    %354 = vrot.lane.b32.xlu0 %v352, 96
    %v355 = vpop.permute.xlu0 %354
    %v357 = vmul.f32 %v337, %v355
    %359 = vrot.lane.b32.xlu0 %v357, 32
    %v360 = vpop.permute.xlu0 %359
    %s362 = scalar_lea.vmem [#allocation12], 4
    %vm363 = vcmask 259076
    %364 = vst.msk [vmem:[%s362 - $0x4] sm:$0x30] %vm363, %v360
    %366 = vrot.lane.b32.xlu0 %v351, 32
    %v367 = vpop.permute.xlu0 %366
    %vm369 = vcmask 521476
    %370 = vst.msk [vmem:[%s362 - $0x4] sm:$0x30] %vm369, %v367
    %v371 = vrot.slane %v357, 4
    %372 = vrot.lane.b32.xlu0 %v371, 32
    %v373 = vpop.permute.xlu0 %372
    %v374 = vsel %vm138, %v373, 0
    %376 = vmatpush.msra.mxu0 0.0
    %377 = vmatpush.msra.mxu0 0.0
    %378 = vmatpush.msra.mxu0 0.0
    %379 = vmatpush.msra.mxu0 0.0
    %380 = vmatpush.msra.mxu0 0.0
    %381 = vmatpush.msra.mxu0 0.0
    %382 = vmatpush.msra.mxu0 0.0
    %383 = vmatpush.msra.mxu0 0.0
    %384 = vmatpush.msra.mxu0 0.0
    %385 = vmatpush.msra.mxu0 0.0
    %386 = vmatpush.msra.mxu0 0.0
    %387 = vmatpush.msra.mxu0 0.0
    %388 = vmatpush.msra.mxu0 %v135
    %389 = vmatpush.msra.mxu0 %v134
    %390 = vmatpush.msra.mxu0 %v133
    %391 = vmatpush.msra.mxu0 %v132
    %392 = vmatmul.f32.gmra.mxu0 %v374
    %v393 = vpop.f32.mrf.mxu0
    %v394 = vadd.f32 0.0, %v393
    %395 = vdwg.mxu0
    %v397 = vrot.slane %v394, 2
    %v399 = vadd.f32 %v127, %v397
    %v400 = vxor.u32 %v399, 2147483648
    %v401 = vmul.f32 %v400, 1.442695
    %v402 = vpow.pop %v401
    %v403 = vadd.f32 %v402, 1.0
    %v404 = vrcp.pop %v403
    %v405 = vmul.f32 %v403, %v404
    %v406 = vsub.f32 1.0, %v405
    %v407 = vmul.f32 %v404, %v406
    %v408 = vadd.f32 %v404, %v407
    %vm409 = vweird.f32 %v403
    %vm410 = vweird.f32 %v404
    %vm411 = vmor %vm409, %vm410
    %v412 = vsel %vm411, %v404, %v408
    %v413 = vand.u32 2147483647, %v403
    %vm414 = vcmp.eq.f32.partialorder %v413, 8.507059e+37
    %v415 = vand.u32 %v403, 2147483648
    %v416 = vor.u32 1.1754944e-38, %v415
    %v417 = vsel %vm414, %v416, %v412
    %v418 = vmul.f32 1.0, %v417
    %v419 = vtanh.pop %v399
    %v420 = vrot.slane %v351, 6
    %v422 = vmul.f32 %v418, %v420
    %424 = vrot.lane.b32.xlu0 %v419, 96
    %v425 = vpop.permute.xlu0 %424
    %v427 = vmul.f32 %v418, %v425
    %429 = vrot.lane.b32.xlu0 %v427, 96
    %v430 = vpop.permute.xlu0 %429
    %v432 = vadd.f32 %v422, %v430
    %v433 = vtanh.pop %v432
    %435 = vrot.lane.b32.xlu0 %v433, 96
    %v436 = vpop.permute.xlu0 %435
    %v438 = vmul.f32 %v418, %v436
    %440 = vrot.lane.b32.xlu0 %v438, 32
    %v441 = vpop.permute.xlu0 %440
    %s443 = scalar_lea.vmem [#allocation12], 6
    %vm444 = vcmask 261126
    %445 = vst.msk [vmem:[%s443 - $0x6] sm:$0xc0] %vm444, %v441
    %447 = vrot.lane.b32.xlu0 %v432, 32
    %v448 = vpop.permute.xlu0 %447
    %vm450 = vcmask 523526
    %451 = vst.msk [vmem:[%s443 - $0x6] sm:$0xc0] %vm450, %v448
    %v452 = vrot.slane %v438, 6
    %453 = vrot.lane.b32.xlu0 %v452, 32
    %v454 = vpop.permute.xlu0 %453
    %v455 = vsel %vm138, %v454, 0
    %457 = vmatpush.msra.mxu0 0.0
    %458 = vmatpush.msra.mxu0 0.0
    %459 = vmatpush.msra.mxu0 0.0
    %460 = vmatpush.msra.mxu0 0.0
    %461 = vmatpush.msra.mxu0 0.0
    %462 = vmatpush.msra.mxu0 0.0
    %463 = vmatpush.msra.mxu0 0.0
    %464 = vmatpush.msra.mxu0 0.0
    %465 = vmatpush.msra.mxu0 0.0
    %466 = vmatpush.msra.mxu0 0.0
    %467 = vmatpush.msra.mxu0 0.0
    %468 = vmatpush.msra.mxu0 0.0
    %469 = vmatpush.msra.mxu0 %v135
    %470 = vmatpush.msra.mxu0 %v134
    %471 = vmatpush.msra.mxu0 %v133
    %472 = vmatpush.msra.mxu0 %v132
    %473 = vmatmul.f32.gmra.mxu0 %v455
    %v474 = vpop.f32.mrf.mxu0
    %v475 = vadd.f32 0.0, %v474
    %476 = vdwg.mxu0
    %v477 = vadd.f32 %v130, %v475
    %v478 = vxor.u32 %v477, 2147483648
    %v479 = vmul.f32 %v478, 1.442695
    %v480 = vpow.pop %v479
    %v481 = vadd.f32 %v480, 1.0
    %v482 = vrcp.pop %v481
    %v483 = vmul.f32 %v481, %v482
    %v484 = vsub.f32 1.0, %v483
    %v485 = vmul.f32 %v482, %v484
    %v486 = vadd.f32 %v482, %v485
    %vm487 = vweird.f32 %v481
    %vm488 = vweird.f32 %v482
    %vm489 = vmor %vm487, %vm488
    %v490 = vsel %vm489, %v482, %v486
    %v491 = vand.u32 2147483647, %v481
    %vm492 = vcmp.eq.f32.partialorder %v491, 8.507059e+37
    %v493 = vand.u32 %v481, 2147483648
    %v494 = vor.u32 1.1754944e-38, %v493
    %v495 = vsel %vm492, %v494, %v490
    %v496 = vmul.f32 1.0, %v495
    %v497 = vtanh.pop %v477
    %v498 = vrot.slane %v432, 6
    %v500 = vmul.f32 %v496, %v498
    %502 = vrot.lane.b32.xlu0 %v497, 96
    %v503 = vpop.permute.xlu0 %502
    %v505 = vmul.f32 %v496, %v503
    %507 = vrot.lane.b32.xlu0 %v505, 96
    %v508 = vpop.permute.xlu0 %507
    %v510 = vadd.f32 %v500, %v508
    %v511 = vtanh.pop %v510
    %513 = vrot.lane.b32.xlu0 %v511, 96
    %v514 = vpop.permute.xlu0 %513
    %v516 = vmul.f32 %v496, %v514
    %518 = vrot.lane.b32.xlu0 %v516, 32
    %v519 = vpop.permute.xlu0 %518
    %s521 = scalar_lea.vmem [#allocation12], 8
    %522 = vst.msk [vmem:[%s521] sm:$0x3] %vm204, %v519
    %524 = vrot.lane.b32.xlu0 %v510, 32
    %v525 = vpop.permute.xlu0 %524
    %527 = vst.msk [vmem:[%s521] sm:$0x3] %vm210, %v525
    %v528 = vsel %vm138, %v519, 0
    %530 = vmatpush.msra.mxu0 0.0
    %531 = vmatpush.msra.mxu0 0.0
    %532 = vmatpush.msra.mxu0 0.0
    %533 = vmatpush.msra.mxu0 0.0
    %534 = vmatpush.msra.mxu0 0.0
    %535 = vmatpush.msra.mxu0 0.0
    %536 = vmatpush.msra.mxu0 0.0
    %537 = vmatpush.msra.mxu0 0.0
    %538 = vmatpush.msra.mxu0 0.0
    %539 = vmatpush.msra.mxu0 0.0
    %540 = vmatpush.msra.mxu0 0.0
    %541 = vmatpush.msra.mxu0 0.0
    %542 = vmatpush.msra.mxu0 %v135
    %543 = vmatpush.msra.mxu0 %v134
    %544 = vmatpush.msra.mxu0 %v133
    %545 = vmatpush.msra.mxu0 %v132
    %546 = vmatmul.f32.gmra.mxu0 %v528
    %v547 = vpop.f32.mrf.mxu0
    %v548 = vadd.f32 0.0, %v547
    %549 = vdwg.mxu0
    %v551 = vrot.slane %v548, 6
    %v553 = vadd.f32 %v130, %v551
    %v554 = vxor.u32 %v553, 2147483648
    %v555 = vmul.f32 %v554, 1.442695
    %v556 = vpow.pop %v555
    %v557 = vadd.f32 %v556, 1.0
    %v558 = vrcp.pop %v557
    %v559 = vmul.f32 %v557, %v558
    %v560 = vsub.f32 1.0, %v559
    %v561 = vmul.f32 %v558, %v560
    %v562 = vadd.f32 %v558, %v561
    %vm563 = vweird.f32 %v557
    %vm564 = vweird.f32 %v558
    %vm565 = vmor %vm563, %vm564
    %v566 = vsel %vm565, %v558, %v562
    %v567 = vand.u32 2147483647, %v557
    %vm568 = vcmp.eq.f32.partialorder %v567, 8.507059e+37
    %v569 = vand.u32 %v557, 2147483648
    %v570 = vor.u32 1.1754944e-38, %v569
    %v571 = vsel %vm568, %v570, %v566
    %v572 = vmul.f32 1.0, %v571
    %v573 = vtanh.pop %v553
    %v574 = vrot.slane %v510, 6
    %v576 = vmul.f32 %v572, %v574
    %578 = vrot.lane.b32.xlu0 %v573, 96
    %v579 = vpop.permute.xlu0 %578
    %v581 = vmul.f32 %v572, %v579
    %583 = vrot.lane.b32.xlu0 %v581, 96
    %v584 = vpop.permute.xlu0 %583
    %v586 = vadd.f32 %v576, %v584
    %v587 = vtanh.pop %v586
    %589 = vrot.lane.b32.xlu0 %v587, 96
    %v590 = vpop.permute.xlu0 %589
    %v592 = vmul.f32 %v572, %v590
    %594 = vrot.lane.b32.xlu0 %v592, 32
    %v595 = vpop.permute.xlu0 %594
    %s597 = scalar_lea.vmem [#allocation12], 10
    %598 = vst.msk [vmem:[%s597 - $0x2] sm:$0xc] %vm282, %v595
    %600 = vrot.lane.b32.xlu0 %v586, 32
    %v601 = vpop.permute.xlu0 %600
    %603 = vst.msk [vmem:[%s597 - $0x2] sm:$0xc] %vm288, %v601
    %v604 = vrot.slane %v592, 2
    %605 = vrot.lane.b32.xlu0 %v604, 32
    %v606 = vpop.permute.xlu0 %605
    %v607 = vsel %vm138, %v606, 0
    %609 = vmatpush.msra.mxu0 0.0
    %610 = vmatpush.msra.mxu0 0.0
    %611 = vmatpush.msra.mxu0 0.0
    %612 = vmatpush.msra.mxu0 0.0
    %613 = vmatpush.msra.mxu0 0.0
    %614 = vmatpush.msra.mxu0 0.0
    %615 = vmatpush.msra.mxu0 0.0
    %616 = vmatpush.msra.mxu0 0.0
    %617 = vmatpush.msra.mxu0 0.0
    %618 = vmatpush.msra.mxu0 0.0
    %619 = vmatpush.msra.mxu0 0.0
    %620 = vmatpush.msra.mxu0 0.0
    %621 = vmatpush.msra.mxu0 %v135
    %622 = vmatpush.msra.mxu0 %v134
    %623 = vmatpush.msra.mxu0 %v133
    %624 = vmatpush.msra.mxu0 %v132
    %625 = vmatmul.f32.gmra.mxu0 %v607
    %v626 = vpop.f32.mrf.mxu0
    %v627 = vadd.f32 0.0, %v626
    %628 = vdwg.mxu0
    %v630 = vrot.slane %v627, 4
    %v632 = vadd.f32 %v130, %v630
    %v633 = vxor.u32 %v632, 2147483648
    %v634 = vmul.f32 %v633, 1.442695
    %v635 = vpow.pop %v634
    %v636 = vadd.f32 %v635, 1.0
    %v637 = vrcp.pop %v636
    %v638 = vmul.f32 %v636, %v637
    %v639 = vsub.f32 1.0, %v638
    %v640 = vmul.f32 %v637, %v639
    %v641 = vadd.f32 %v637, %v640
    %vm642 = vweird.f32 %v636
    %vm643 = vweird.f32 %v637
    %vm644 = vmor %vm642, %vm643
    %v645 = vsel %vm644, %v637, %v641
    %v646 = vand.u32 2147483647, %v636
    %vm647 = vcmp.eq.f32.partialorder %v646, 8.507059e+37
    %v648 = vand.u32 %v636, 2147483648
    %v649 = vor.u32 1.1754944e-38, %v648
    %v650 = vsel %vm647, %v649, %v645
    %v651 = vmul.f32 1.0, %v650
    %v652 = vtanh.pop %v632
    %v653 = vrot.slane %v586, 6
    %v655 = vmul.f32 %v651, %v653
    %657 = vrot.lane.b32.xlu0 %v652, 96
    %v658 = vpop.permute.xlu0 %657
    %v660 = vmul.f32 %v651, %v658
    %662 = vrot.lane.b32.xlu0 %v660, 96
    %v663 = vpop.permute.xlu0 %662
    %v665 = vadd.f32 %v655, %v663
    %v666 = vtanh.pop %v665
    %668 = vrot.lane.b32.xlu0 %v666, 96
    %v669 = vpop.permute.xlu0 %668
    %v671 = vmul.f32 %v651, %v669
    %673 = vrot.lane.b32.xlu0 %v671, 32
    %v674 = vpop.permute.xlu0 %673
    %s676 = scalar_lea.vmem [#allocation12], 12
    %677 = vst.msk [vmem:[%s676 - $0x4] sm:$0x30] %vm363, %v674
    %679 = vrot.lane.b32.xlu0 %v665, 32
    %v680 = vpop.permute.xlu0 %679
    %682 = vst.msk [vmem:[%s676 - $0x4] sm:$0x30] %vm369, %v680
    %v683 = vrot.slane %v671, 4
    %684 = vrot.lane.b32.xlu0 %v683, 32
    %v685 = vpop.permute.xlu0 %684
    %v686 = vsel %vm138, %v685, 0
    %688 = vmatpush.msra.mxu0 0.0
    %689 = vmatpush.msra.mxu0 0.0
    %690 = vmatpush.msra.mxu0 0.0
    %691 = vmatpush.msra.mxu0 0.0
    %692 = vmatpush.msra.mxu0 0.0
    %693 = vmatpush.msra.mxu0 0.0
    %694 = vmatpush.msra.mxu0 0.0
    %695 = vmatpush.msra.mxu0 0.0
    %696 = vmatpush.msra.mxu0 0.0
    %697 = vmatpush.msra.mxu0 0.0
    %698 = vmatpush.msra.mxu0 0.0
    %699 = vmatpush.msra.mxu0 0.0
    %700 = vmatpush.msra.mxu0 %v135
    %701 = vmatpush.msra.mxu0 %v134
    %702 = vmatpush.msra.mxu0 %v133
    %703 = vmatpush.msra.mxu0 %v132
    %704 = vmatmul.f32.gmra.mxu0 %v686
    %v705 = vpop.f32.mrf.mxu0
    %v706 = vadd.f32 0.0, %v705
    %707 = vdwg.mxu0
    %v709 = vrot.slane %v706, 2
    %v711 = vadd.f32 %v130, %v709
    %v712 = vxor.u32 %v711, 2147483648
    %v713 = vmul.f32 %v712, 1.442695
    %v714 = vpow.pop %v713
    %v715 = vadd.f32 %v714, 1.0
    %v716 = vrcp.pop %v715
    %v717 = vmul.f32 %v715, %v716
    %v718 = vsub.f32 1.0, %v717
    %v719 = vmul.f32 %v716, %v718
    %v720 = vadd.f32 %v716, %v719
    %vm721 = vweird.f32 %v715
    %vm722 = vweird.f32 %v716
    %vm723 = vmor %vm721, %vm722
    %v724 = vsel %vm723, %v716, %v720
    %v725 = vand.u32 2147483647, %v715
    %vm726 = vcmp.eq.f32.partialorder %v725, 8.507059e+37
    %v727 = vand.u32 %v715, 2147483648
    %v728 = vor.u32 1.1754944e-38, %v727
    %v729 = vsel %vm726, %v728, %v724
    %v730 = vmul.f32 1.0, %v729
    %v731 = vtanh.pop %v711
    %v732 = vrot.slane %v665, 6
    %v734 = vmul.f32 %v730, %v732
    %736 = vrot.lane.b32.xlu0 %v731, 96
    %v737 = vpop.permute.xlu0 %736
    %v739 = vmul.f32 %v730, %v737
    %741 = vrot.lane.b32.xlu0 %v739, 96
    %v742 = vpop.permute.xlu0 %741
    %v744 = vadd.f32 %v734, %v742
    %v745 = vtanh.pop %v744
    %747 = vrot.lane.b32.xlu0 %v745, 96
    %v748 = vpop.permute.xlu0 %747
    %v750 = vmul.f32 %v730, %v748
    %752 = vrot.lane.b32.xlu0 %v750, 32
    %v753 = vpop.permute.xlu0 %752
    %s755 = scalar_lea.vmem [#allocation12], 14
    %756 = vst.msk [vmem:[%s755 - $0x6] sm:$0xc0] %vm444, %v753
    %758 = vrot.lane.b32.xlu0 %v744, 32
    %v759 = vpop.permute.xlu0 %758
    %761 = vst.msk [vmem:[%s755 - $0x6] sm:$0xc0] %vm450, %v759
    %762 = vst.msk [vmem:[#allocation2 - $0x6] sm:$0xc0] %vm444, %v753
    %763 = vst.msk [vmem:[#allocation3 - $0x6] sm:$0xc0] %vm444, %v744
    // Predicated region
    $region46: #{tpu_custom_call.1} parent=1 // pred_check
      _
    $region47: #{tpu_custom_call.1} parent=1 // pred_check_branch
      %765 = sbr.rel (0) target = $region49
    $region48: #{tpu_custom_call.1} parent=1 // pred_region
      %767 = vsyncadd [#allocation6], 0
      %s768 = sshll.u32 [#allocation12], 4
      %s769 = int_to_ptr.vmem [resolvable:$true] %s768
      %s770 = sshll.u32 %s6, 4
      %s771 = int_to_ptr.hbm [resolvable:$true] %s770
      %776 = dma.vmem_to_hbm [thread:$0]  %s769, 256, %s771, [#allocation6], 32, 32, 2
    $region49: #{tpu_custom_call.1} parent=1 // pred_fallthru
      _
    // Predicated region
    $region50: #{tpu_custom_call.1} parent=1 // pred_check
      _
    $region51: #{tpu_custom_call.1} parent=1 // pred_check_branch
      %778 = sbr.rel (0) target = $region53
    $region52: #{tpu_custom_call.1} parent=1 // pred_region
      %780 = dma.done [#allocation6], 256
    $region53: #{tpu_custom_call.1} parent=1 // pred_fallthru
      _
    %781 = vsyncpa [#allocation5], 1
    %782 = vsyncpa [#allocation8], 1
    %783 = vsyncpa [#allocation11], 1
    %784 = vsyncpa [#allocation6], 1

</llo_original>
